<compile_context>
chip_gen: v7x
topology: tpu7x:2x2x1
jax: 0.10.0
libtpu: 0.0.40
codegen_flags: <defaults>
</compile_context>

<pallas_src>
import math

import jax
import jax.numpy as jnp
from jax import lax
from jax.experimental import pallas as pl
from jax.experimental.pallas import tpu as pltpu


_LANE = 128      # lane (last-dim) granule
_SUBLANE = 16    # sublane granule (covers f32 (8) and bf16 (16) packing)


def _round_up(x, m):
    return ((x + m - 1) // m) * m


def _gelu_exact(x):
    # torch nn.GELU default: 0.5 * x * (1 + erf(x / sqrt(2)))
    return 0.5 * x * (1.0 + lax.erf(x * (1.0 / math.sqrt(2.0))))


# ----------------------------------------------------------------------------
# Kernels
# ----------------------------------------------------------------------------
def _mlp_fused_kernel(x_ref, w1_ref, b1_ref, w2_ref, b2_ref, o_ref, acc_ref):
    # x_ref:  (TM, IN_P)    w1_ref: (IN_P, TH)    b1_ref: (1, TH)
    # w2_ref: (TH, OUT_P)   b2_ref: (1, OUT_P)    o_ref:  (TM, OUT_P)
    # acc_ref: (TM, OUT_P) f32 scratch; hidden axis (grid axis 1) is reduced.
    h_idx = pl.program_id(1)

    @pl.when(h_idx == 0)
    def _init():
        # Fold the fc2 bias into the accumulator init (saves a VPU pass).
        acc_ref[...] = jnp.broadcast_to(
            b2_ref[...].astype(jnp.float32), acc_ref.shape)

    # fc1 chunk: (TM, IN_P) @ (IN_P, TH) -> f32, bias + exact GELU in f32.
    h = jnp.dot(x_ref[...], w1_ref[...], preferred_element_type=jnp.float32)
    h = _gelu_exact(h + b1_ref[...].astype(jnp.float32))

    # fc2 chunk: accumulate (TM, TH) @ (TH, OUT_P) into the f32 accumulator.
    acc_ref[...] += jnp.dot(h.astype(w2_ref.dtype), w2_ref[...],
                            preferred_element_type=jnp.float32)

    @pl.when(h_idx == pl.num_programs(1) - 1)
    def _finalize():
        o_ref[...] = acc_ref[...].astype(o_ref.dtype)


def _mlp_fc1_kernel(x_ref, w1_ref, b1_ref, o_ref):
    # fc2 is None: just fc1 + GELU. Hidden axis is an output (N) axis here.
    h = jnp.dot(x_ref[...], w1_ref[...], preferred_element_type=jnp.float32)
    o_ref[...] = _gelu_exact(h + b1_ref[...].astype(jnp.float32)).astype(
        o_ref.dtype)


# ----------------------------------------------------------------------------
# Wrapper
# ----------------------------------------------------------------------------
def mlp_pallas(x, w1, b1, w2=None, b2=None, *, tile_m=256, tile_h=512,
               compute_dtype=None, interpret=False):
    """Fused MLP forward: gelu(x @ w1 + b1) [@ w2 + b2].

    x:  [..., in_features]
    w1: [in_features, hidden]          (pre-transposed vs torch's [out, in])
    b1: [hidden]
    w2: [hidden, out_features] or None (matches torch module's optional fc2)
    b2: [out_features] or None
    compute_dtype: e.g. jnp.bfloat16 to run the matmuls in bf16 (f32 accum).
    """
    orig_shape = x.shape
    out_dtype = x.dtype
    in_f = orig_shape[-1]
    hid = w1.shape[1]
    has_fc2 = w2 is not None
    out_f = w2.shape[1] if has_fc2 else hid

    x2d = x.reshape(-1, in_f)
    n = x2d.shape[0]

    if compute_dtype is not None:
        x2d = x2d.astype(compute_dtype)
        w1 = w1.astype(compute_dtype)
        if has_fc2:
            w2 = w2.astype(compute_dtype)

    # Biases are applied in f32 inside the kernel.
    b1 = b1.astype(jnp.float32).reshape(1, hid)
    if has_fc2:
        b2 = b2.astype(jnp.float32).reshape(1, out_f)

    # --- lane/sublane-dense padding -----------------------------------------
    in_p = _round_up(in_f, _LANE)
    hid_p = _round_up(hid, _LANE)
    out_p = _round_up(out_f, _LANE) if has_fc2 else hid_p

    tile_m = _round_up(min(tile_m, _round_up(n, _SUBLANE)), _SUBLANE)
    tile_h = _round_up(min(tile_h, hid_p), _LANE)
    n_p = _round_up(n, tile_m)

    x2d = jnp.pad(x2d, ((0, n_p - n), (0, in_p - in_f)))
    w1 = jnp.pad(w1, ((0, in_p - in_f), (0, hid_p - hid)))
    b1 = jnp.pad(b1, ((0, 0), (0, hid_p - hid)))
    if has_fc2:
        w2 = jnp.pad(w2, ((0, hid_p - hid), (0, out_p - out_f)))
        b2 = jnp.pad(b2, ((0, 0), (0, out_p - out_f)))

    m_tiles = n_p // tile_m
    h_tiles = hid_p // tile_h
    itemsize = jnp.dtype(x2d.dtype).itemsize
    out_itemsize = jnp.dtype(out_dtype).itemsize

    if has_fc2:
        # VMEM footprint: double-buffered input/output tiles + f32 accumulator.
        est_vmem = (2 * (tile_m * in_p + in_p * tile_h + tile_h * out_p
                         + tile_m * out_p) * itemsize
                    + 2 * (tile_h + out_p) * 4
                    + tile_m * out_p * 4)
        vmem_limit = int(min(max(est_vmem + (8 << 20), 32 << 20), 64 << 20))

        cost = pl.CostEstimate(
            flops=2 * n_p * (in_p * hid_p + hid_p * out_p),
            transcendentals=n_p * hid_p,
            bytes_accessed=(x2d.size + w1.size + w2.size) * itemsize
                           + (b1.size + b2.size) * 4
                           + n_p * out_p * out_itemsize)

        # TODO(synk): for very large out_features add an output-N grid axis so
        # the (tile_h, out_p) w2 tile and the accumulator stay VMEM-bounded.
        out2d = pl.pallas_call(
            _mlp_fused_kernel,
            out_shape=jax.ShapeDtypeStruct((n_p, out_p), out_dtype),
            grid_spec=pltpu.PrefetchScalarGridSpec(
                num_scalar_prefetch=0,
                grid=(m_tiles, h_tiles),
                in_specs=[
                    pl.BlockSpec((tile_m, in_p), lambda i, h: (i, 0)),
                    pl.BlockSpec((in_p, tile_h), lambda i, h: (0, h)),
                    pl.BlockSpec((1, tile_h), lambda i, h: (0, h)),
                    pl.BlockSpec((tile_h, out_p), lambda i, h: (h, 0)),
                    pl.BlockSpec((1, out_p), lambda i, h: (0, 0)),
                ],
                out_specs=pl.BlockSpec((tile_m, out_p), lambda i, h: (i, 0)),
                scratch_shapes=[pltpu.VMEM((tile_m, out_p), jnp.float32)],
            ),
            compiler_params=pltpu.CompilerParams(
                dimension_semantics=("parallel", "arbitrary"),
                vmem_limit_bytes=vmem_limit,
            ),
            cost_estimate=cost,
            interpret=interpret,
        )(x2d, w1, b1, w2, b2)
    else:
        est_vmem = (2 * (tile_m * in_p + in_p * tile_h) * itemsize
                    + 2 * tile_h * 4
                    + 2 * tile_m * tile_h * out_itemsize)
        vmem_limit = int(min(max(est_vmem + (8 << 20), 32 << 20), 64 << 20))

        cost = pl.CostEstimate(
            flops=2 * n_p * in_p * hid_p,
            transcendentals=n_p * hid_p,
            bytes_accessed=(x2d.size + w1.size) * itemsize + b1.size * 4
                           + n_p * hid_p * out_itemsize)

        out2d = pl.pallas_call(
            _mlp_fc1_kernel,
            out_shape=jax.ShapeDtypeStruct((n_p, hid_p), out_dtype),
            grid_spec=pltpu.PrefetchScalarGridSpec(
                num_scalar_prefetch=0,
                grid=(m_tiles, h_tiles),
                in_specs=[
                    pl.BlockSpec((tile_m, in_p), lambda i, h: (i, 0)),
                    pl.BlockSpec((in_p, tile_h), lambda i, h: (0, h)),
                    pl.BlockSpec((1, tile_h), lambda i, h: (0, h)),
                ],
                out_specs=pl.BlockSpec((tile_m, tile_h), lambda i, h: (i, h)),
            ),
            compiler_params=pltpu.CompilerParams(
                dimension_semantics=("parallel", "parallel"),
                vmem_limit_bytes=vmem_limit,
            ),
            cost_estimate=cost,
            interpret=interpret,
        )(x2d, w1, b1)

    out2d = out2d[:n, :out_f]
    return out2d.reshape(*orig_shape[:-1], out_f)


# ----------------------------------------------------------------------------
# Reference & test
# ----------------------------------------------------------------------------
def _torch_linear_init(key, fan_in, fan_out, dtype=jnp.float32):
    # deterministic init mimicking torch nn.Linear (uniform +/- 1/sqrt(fan_in))
    kw, kb = jax.random.split(key)
    bound = 1.0 / math.sqrt(fan_in)
    # stored pre-transposed: [fan_in, fan_out]
    w = jax.random.uniform(kw, (fan_in, fan_out), dtype, -bound, bound)
    b = jax.random.uniform(kb, (fan_out,), dtype, -bound, bound)
    return w, b


def mlp_reference(x, w1, b1, w2=None, b2=None):
    h = _gelu_exact(x @ w1 + b1)
    if w2 is None:
        return h
    return h @ w2 + b2


if __name__ == "__main__":
    key = jax.random.PRNGKey(0)
    k_x, k_fc1, k_fc2 = jax.random.split(key, 3)

    # small shapes: batch=2, seq=8, in_features=32, hidden=64, out_features=32
    batch, seq = 2, 8
    in_features, hidden_features, out_features = 32, 64, 32

    x = jax.random.normal(k_x, (batch, seq, in_features), jnp.float32)
    w1, b1 = _torch_linear_init(k_fc1, in_features, hidden_features)
    w2, b2 = _torch_linear_init(k_fc2, hidden_features, out_features)

    # 1) f32 path: exact parity with the torch module (default dtype).
    out = mlp_pallas(x, w1, b1, w2, b2)
    out = jax.block_until_ready(out)
    ref = mlp_reference(x, w1, b1, w2, b2)
    assert out.shape == (batch, seq, out_features)
    assert jnp.allclose(out, ref, atol=1e-5, rtol=1e-5), "f32 path mismatch"

    # 2) bf16 MXU path (production-perf mode): compare against a reference
    #    that applies the same bf16 rounding (f32 accumulation throughout).
    out_bf16 = mlp_pallas(x, w1, b1, w2, b2, compute_dtype=jnp.bfloat16)
    out_bf16 = jax.block_until_ready(out_bf16)
    xb = x.astype(jnp.bfloat16).astype(jnp.float32)
    w1b = w1.astype(jnp.bfloat16).astype(jnp.float32)
    w2b = w2.astype(jnp.bfloat16).astype(jnp.float32)
    hb = _gelu_exact(xb @ w1b + b1)
    hb = hb.astype(jnp.bfloat16).astype(jnp.float32)
    ref_bf16 = hb @ w2b + b2
    assert jnp.allclose(out_bf16, ref_bf16, atol=2e-2, rtol=2e-2), \
        "bf16 path mismatch"

    # 3) fc2=None variant of the module (fc1 + GELU only).
    out_fc1 = mlp_pallas(x, w1, b1)
    out_fc1 = jax.block_until_ready(out_fc1)
    ref_fc1 = mlp_reference(x, w1, b1)
    assert out_fc1.shape == (batch, seq, hidden_features)
    assert jnp.allclose(out_fc1, ref_fc1, atol=1e-5, rtol=1e-5), \
        "fc1-only path mismatch"

    print("KERNEL_OK")
</pallas_src>

<mosaic_0001>
module attributes {stable_mosaic.version = 11 : i64} {
  func.func @_mlp_fused_kernel(%arg0: i32, %arg1: i32, %arg2: memref<16x128xf32, #tpu.memory_space<vmem>>, %arg3: memref<128x128xf32, #tpu.memory_space<vmem>>, %arg4: memref<1x128xf32, #tpu.memory_space<vmem>>, %arg5: memref<128x128xf32, #tpu.memory_space<vmem>>, %arg6: memref<1x128xf32, #tpu.memory_space<vmem>>, %arg7: memref<16x128xf32, #tpu.memory_space<vmem>>, %arg8: memref<16x128xf32, #tpu.memory_space<vmem>>) attributes {dimension_semantics = [#tpu.dimension_semantics<parallel>, #tpu.dimension_semantics<arbitrary>], iteration_bounds = array<i64: 1, 1>, scalar_prefetch = 0 : i64, scratch_operands = 1 : i64, tpu.core_type = #tpu.core_type<tc>, window_params = [{transform_indices = @transform_0, window_bounds = array<i64: 16, 128>}, {transform_indices = @transform_1, window_bounds = array<i64: 128, 128>}, {transform_indices = @transform_2, window_bounds = array<i64: 1, 128>}, {transform_indices = @transform_3, window_bounds = array<i64: 128, 128>}, {pipeline_mode = #tpu.pipeline_mode<synchronous>, transform_indices = @transform_4, window_bounds = array<i64: 1, 128>}, {transform_indices = @transform_5, window_bounds = array<i64: 16, 128>}]} {
    %c0_i32 = arith.constant 0 : i32
    %0 = arith.cmpi eq, %arg1, %c0_i32 : i32
    %1 = arith.extui %0 : i1 to i32
    %c0_i32_0 = arith.constant 0 : i32
    %2 = arith.cmpi ne, %1, %c0_i32_0 : i32
    scf.if %2 {
      %c0_18 = arith.constant 0 : index
      %c0_19 = arith.constant 0 : index
      %25 = vector.load %arg6[%c0_18, %c0_19] : memref<1x128xf32, #tpu.memory_space<vmem>>, vector<1x128xf32>
      %26 = vector.shape_cast %25 : vector<1x128xf32> to vector<1x128xf32>
      %27 = vector.broadcast %26 : vector<1x128xf32> to vector<16x128xf32>
      %c0_20 = arith.constant 0 : index
      %c0_21 = arith.constant 0 : index
      %28 = vector.load %arg8[%c0_20, %c0_21] : memref<16x128xf32, #tpu.memory_space<vmem>>, vector<16x128xf32>
      tpu.vector_store %arg8[%c0_20, %c0_21], %27 {strides = array<i32>} : memref<16x128xf32, #tpu.memory_space<vmem>>, vector<16x128xf32>,
    } else {
    }
    %c0 = arith.constant 0 : index
    %c0_1 = arith.constant 0 : index
    %3 = vector.load %arg2[%c0, %c0_1] : memref<16x128xf32, #tpu.memory_space<vmem>>, vector<16x128xf32>
    %c0_2 = arith.constant 0 : index
    %c0_3 = arith.constant 0 : index
    %4 = vector.load %arg3[%c0_2, %c0_3] : memref<128x128xf32, #tpu.memory_space<vmem>>, vector<128x128xf32>
    %cst = arith.constant dense<0.000000e+00> : vector<16x128xf32>
    %5 = tpu.matmul %3, %4, %cst {dimension_numbers = #tpu.dot_dimension_numbers<[1], [0], [0], [1], [0, 0, 1, 1], [], []>} : vector<16x128xf32>, vector<128x128xf32>, vector<16x128xf32> -> vector<16x128xf32>
    %c0_4 = arith.constant 0 : index
    %c0_5 = arith.constant 0 : index
    %6 = vector.load %arg4[%c0_4, %c0_5] : memref<1x128xf32, #tpu.memory_space<vmem>>, vector<1x128xf32>
    %7 = vector.broadcast %6 : vector<1x128xf32> to vector<16x128xf32>
    %8 = arith.addf %5, %7 : vector<16x128xf32>
    %cst_6 = arith.constant 5.000000e-01 : f32
    %9 = vector.broadcast %cst_6 : f32 to vector<16x128xf32>
    %10 = arith.mulf %9, %8 : vector<16x128xf32>
    %cst_7 = arith.constant 0.707106769 : f32
    %11 = vector.broadcast %cst_7 : f32 to vector<16x128xf32>
    %12 = arith.mulf %8, %11 : vector<16x128xf32>
    %13 = math.erf %12 : vector<16x128xf32>
    %cst_8 = arith.constant 1.000000e+00 : f32
    %14 = vector.broadcast %cst_8 : f32 to vector<16x128xf32>
    %15 = arith.addf %14, %13 : vector<16x128xf32>
    %16 = arith.mulf %10, %15 : vector<16x128xf32>
    %c0_9 = arith.constant 0 : index
    %c0_10 = arith.constant 0 : index
    %17 = vector.load %arg8[%c0_9, %c0_10] : memref<16x128xf32, #tpu.memory_space<vmem>>, vector<16x128xf32>
    %c0_11 = arith.constant 0 : index
    %c0_12 = arith.constant 0 : index
    %18 = vector.load %arg5[%c0_11, %c0_12] : memref<128x128xf32, #tpu.memory_space<vmem>>, vector<128x128xf32>
    %cst_13 = arith.constant dense<0.000000e+00> : vector<16x128xf32>
    %19 = tpu.matmul %16, %18, %cst_13 {dimension_numbers = #tpu.dot_dimension_numbers<[1], [0], [0], [1], [0, 0, 1, 1], [], []>} : vector<16x128xf32>, vector<128x128xf32>, vector<16x128xf32> -> vector<16x128xf32>
    %20 = arith.addf %17, %19 : vector<16x128xf32>
    %c0_14 = arith.constant 0 : index
    %c0_15 = arith.constant 0 : index
    %21 = vector.load %arg8[%c0_14, %c0_15] : memref<16x128xf32, #tpu.memory_space<vmem>>, vector<16x128xf32>
    tpu.vector_store %arg8[%c0_14, %c0_15], %20 {strides = array<i32>} : memref<16x128xf32, #tpu.memory_space<vmem>>, vector<16x128xf32>,
    %c0_i32_16 = arith.constant 0 : i32
    %22 = arith.cmpi eq, %arg1, %c0_i32_16 : i32
    %23 = arith.extui %22 : i1 to i32
    %c0_i32_17 = arith.constant 0 : i32
    %24 = arith.cmpi ne, %23, %c0_i32_17 : i32
    scf.if %24 {
      %c0_18 = arith.constant 0 : index
      %c0_19 = arith.constant 0 : index
      %25 = vector.load %arg8[%c0_18, %c0_19] : memref<16x128xf32, #tpu.memory_space<vmem>>, vector<16x128xf32>
      %c0_20 = arith.constant 0 : index
      %c0_21 = arith.constant 0 : index
      %26 = vector.load %arg7[%c0_20, %c0_21] : memref<16x128xf32, #tpu.memory_space<vmem>>, vector<16x128xf32>
      tpu.vector_store %arg7[%c0_20, %c0_21], %25 {strides = array<i32>} : memref<16x128xf32, #tpu.memory_space<vmem>>, vector<16x128xf32>,
    } else {
    }
    return
  }
  func.func @transform_0(%arg0: i32, %arg1: i32) -> (i32, i32) {
    %c0_i32 = arith.constant 0 : i32
    %c0_i32_0 = arith.constant 0 : i32
    return %arg0, %c0_i32 : i32, i32
  }
  func.func @transform_1(%arg0: i32, %arg1: i32) -> (i32, i32) {
    %c0_i32 = arith.constant 0 : i32
    %c0_i32_0 = arith.constant 0 : i32
    return %c0_i32, %arg1 : i32, i32
  }
  func.func @transform_2(%arg0: i32, %arg1: i32) -> (i32, i32) {
    %c0_i32 = arith.constant 0 : i32
    %c0_i32_0 = arith.constant 0 : i32
    return %c0_i32, %arg1 : i32, i32
  }
  func.func @transform_3(%arg0: i32, %arg1: i32) -> (i32, i32) {
    %c0_i32 = arith.constant 0 : i32
    %c0_i32_0 = arith.constant 0 : i32
    return %arg1, %c0_i32 : i32, i32
  }
  func.func @transform_4(%arg0: i32, %arg1: i32) -> (i32, i32) {
    %c0_i32 = arith.constant 0 : i32
    %c0_i32_0 = arith.constant 0 : i32
    %c0_i32_1 = arith.constant 0 : i32
    return %c0_i32, %c0_i32_0 : i32, i32
  }
  func.func @transform_5(%arg0: i32, %arg1: i32) -> (i32, i32) {
    %c0_i32 = arith.constant 0 : i32
    %c0_i32_0 = arith.constant 0 : i32
    return %arg0, %c0_i32 : i32, i32
  }
}

</mosaic_0001>

<llo_original>
// kernel: tpu_custom_call.1
$region0: #{tpu_custom_call.1}
  #allocation0 [shape = 'u32[]', space=smem, size = 0x4, offset = 0x4, fixed_abs, tag = 'smem constant byte address 0x4 - core index']
  #allocation1 [shape = 'u32[144,128]{1,0:T(1,128)}', space=vmem, size = 0x12000, scoped, tag = 'internal scratch']
  #allocation2 [shape = 'f32[16,128]{1,0:T(8,128)}', space=vmem, size = 0x2000, scoped, tag = 'scratch operand']
  %s0 = inlined_call_operand.hbm [shape: f32[16,128], index: 0, kind: input, shape index: {}]
  %s1 = inlined_call_operand.hbm [shape: f32[128,128], index: 1, kind: input, shape index: {}]
  %s2 = inlined_call_operand.vmem [shape: f32[1,128], index: 2, kind: input, shape index: {}]
  %s3 = inlined_call_operand.hbm [shape: f32[128,128], index: 3, kind: input, shape index: {}]
  %s4 = inlined_call_operand.vmem [shape: f32[1,128], index: 4, kind: input, shape index: {}]
  %s5 = inlined_call_operand.hbm [shape: f32[16,128], index: 5, kind: output, shape index: {}]
  %s6 = sld [smem:[#allocation0]]
  $region50: #{tpu_custom_call.1} parent=0
    _
  %s8 = ssub.s32 1, %s6
  %s9 = scalar_select 0, %s8, %s6
  $region1: #{tpu_custom_call.1} parent=0
    #allocation3 [shape = 'u8[8192]{0}', space=vmem, size = 0x2000, scoped, tag = 'input window, operand 0, single buffered']
    #allocation4 [shape = 's32[1]{0}', space=sflag, size = 0x4, scoped, tag = 'scoped memory for tpu_custom_call.1']
    #allocation5 [shape = 's32[1]{0}', space=sflag, size = 0x4, scoped, tag = 'scoped memory for tpu_custom_call.1']
    #allocation6 [shape = 'u8[65536]{0}', space=vmem, size = 0x10000, scoped, tag = 'input window, operand 1, single buffered']
    #allocation7 [shape = 's32[1]{0}', space=sflag, size = 0x4, scoped, tag = 'scoped memory for tpu_custom_call.1']
    #allocation8 [shape = 'u8[65536]{0}', space=vmem, size = 0x10000, scoped, tag = 'input window, operand 3, single buffered']
    #allocation9 [shape = 'u8[8192]{0}', space=vmem, size = 0x2000, scoped, tag = 'output window, operand 0, single buffered']
    %10 = vsyncpa [#allocation4], 0
    %11 = vsyncpa [#allocation7], 0
    %12 = vsyncpa [#allocation5], 0
    // Predicated region
    $region2: #{tpu_custom_call.1} parent=1 // pred_check
      _
    $region3: #{tpu_custom_call.1} parent=1 // pred_check_branch
      %14 = sbr.rel (0) target = $region5
    $region4: #{tpu_custom_call.1} parent=1 // pred_region
      %s16 = ssub.s32 256, 256
      %17 = vsyncadd [#allocation4], %s16
      %s18 = sshll.u32 [#allocation3], 4
      %s19 = int_to_ptr.vmem [resolvable:$true] %s18
      %24 = dma.hbm_to_vmem [thread:$0]  %s0, 256, %s19, [#allocation4], 128, 128, 8
    $region5: #{tpu_custom_call.1} parent=1 // pred_fallthru
      _
    // Predicated region
    $region6: #{tpu_custom_call.1} parent=1 // pred_check
      _
    $region7: #{tpu_custom_call.1} parent=1 // pred_check_branch
      %26 = sbr.rel (0) target = $region9
    $region8: #{tpu_custom_call.1} parent=1 // pred_region
      %s28 = ssub.s32 2048, 2048
      %29 = vsyncadd [#allocation7], %s28
      %s30 = sshll.u32 [#allocation6], 4
      %s31 = int_to_ptr.vmem [resolvable:$true] %s30
      %36 = dma.hbm_to_vmem [thread:$0]  %s1, 2048, %s31, [#allocation7], 128, 128, 8
    $region9: #{tpu_custom_call.1} parent=1 // pred_fallthru
      _
    // Predicated region
    $region10: #{tpu_custom_call.1} parent=1 // pred_check
      _
    $region11: #{tpu_custom_call.1} parent=1 // pred_check_branch
      %38 = sbr.rel (0) target = $region13
    $region12: #{tpu_custom_call.1} parent=1 // pred_region
      _
    $region13: #{tpu_custom_call.1} parent=1 // pred_fallthru
      _
    // Predicated region
    $region14: #{tpu_custom_call.1} parent=1 // pred_check
      _
    $region15: #{tpu_custom_call.1} parent=1 // pred_check_branch
      %40 = sbr.rel (0) target = $region17
    $region16: #{tpu_custom_call.1} parent=1 // pred_region
      %s42 = ssub.s32 2048, 2048
      %43 = vsyncadd [#allocation7], %s42
      %s44 = sshll.u32 [#allocation8], 4
      %s45 = int_to_ptr.vmem [resolvable:$true] %s44
      %50 = dma.hbm_to_vmem [thread:$0]  %s3, 2048, %s45, [#allocation7], 128, 128, 8
    $region17: #{tpu_custom_call.1} parent=1 // pred_fallthru
      _
    // Predicated region
    $region18: #{tpu_custom_call.1} parent=1 // pred_check
      _
    $region19: #{tpu_custom_call.1} parent=1 // pred_check_branch
      %52 = sbr.rel (0) target = $region21
    $region20: #{tpu_custom_call.1} parent=1 // pred_region
      _
    $region21: #{tpu_custom_call.1} parent=1 // pred_fallthru
      _
    // Predicated region
    $region22: #{tpu_custom_call.1} parent=1 // pred_check
      _
    $region23: #{tpu_custom_call.1} parent=1 // pred_check_branch
      %54 = sbr.rel (0) target = $region25
    $region24: #{tpu_custom_call.1} parent=1 // pred_region
      %55 = dma.done [#allocation4], 256
    $region25: #{tpu_custom_call.1} parent=1 // pred_fallthru
      _
    // Predicated region
    $region26: #{tpu_custom_call.1} parent=1 // pred_check
      _
    $region27: #{tpu_custom_call.1} parent=1 // pred_check_branch
      %57 = sbr.rel (0) target = $region29
    $region28: #{tpu_custom_call.1} parent=1 // pred_region
      %58 = dma.done [#allocation7], 2048
    $region29: #{tpu_custom_call.1} parent=1 // pred_fallthru
      _
    // Predicated region
    $region30: #{tpu_custom_call.1} parent=1 // pred_check
      _
    $region31: #{tpu_custom_call.1} parent=1 // pred_check_branch
      %60 = sbr.rel (0) target = $region33
    $region32: #{tpu_custom_call.1} parent=1 // pred_region
      %61 = dma.done [#allocation7], 2048
    $region33: #{tpu_custom_call.1} parent=1 // pred_fallthru
      _
    %p62 = scmp.eq.s32.totalorder 0, 0
    // Predicated region
    $region34: #{tpu_custom_call.1} parent=1 // pred_check
      %p63 = pneg %p62
    $region35: #{tpu_custom_call.1} parent=1 // pred_check_branch
      %65 = sbr.rel (%p63) target = $region37
    $region36: #{tpu_custom_call.1} parent=1 // pred_region
      %v66 = vld [vmem:[%s4] sm:$0x1]
      %v68 = vlaneseq
      %v69 = vshrl.u32 %v68, 7
      %v70 = vsub.s32 0, %v69
      %v71 = vrot.slane %v66, %v70
      %73 = vst [vmem:[#allocation2] sm:$0xff] %v71
      %74 = vst [vmem:[#allocation2 + $0x8] sm:$0xff] %v71
    $region37: #{tpu_custom_call.1} parent=1 // pred_fallthru
      _
    %v75 = vld [vmem:[#allocation3] sm:$0xff]
    %v76 = vld [vmem:[#allocation3 + $0x8] sm:$0xff]
    %v77 = vld [vmem:[#allocation6] sm:$0xff]
    %v78 = vld [vmem:[#allocation6 + $0x8] sm:$0xff]
    %v79 = vld [vmem:[#allocation6 + $0x10] sm:$0xff]
    %v80 = vld [vmem:[#allocation6 + $0x18] sm:$0xff]
    %v81 = vld [vmem:[#allocation6 + $0x20] sm:$0xff]
    %v82 = vld [vmem:[#allocation6 + $0x28] sm:$0xff]
    %v83 = vld [vmem:[#allocation6 + $0x30] sm:$0xff]
    %v84 = vld [vmem:[#allocation6 + $0x38] sm:$0xff]
    %v85 = vld [vmem:[#allocation6 + $0x40] sm:$0xff]
    %v86 = vld [vmem:[#allocation6 + $0x48] sm:$0xff]
    %v87 = vld [vmem:[#allocation6 + $0x50] sm:$0xff]
    %v88 = vld [vmem:[#allocation6 + $0x58] sm:$0xff]
    %v89 = vld [vmem:[#allocation6 + $0x60] sm:$0xff]
    %v90 = vld [vmem:[#allocation6 + $0x68] sm:$0xff]
    %v91 = vld [vmem:[#allocation6 + $0x70] sm:$0xff]
    %v92 = vld [vmem:[#allocation6 + $0x78] sm:$0xff]
    %v93 = vld [vmem:[%s2] sm:$0x1]
    %v95 = vlaneseq
    %v96 = vshrl.u32 %v95, 7
    %v97 = vsub.s32 0, %v96
    %v98 = vrot.slane %v93, %v97
    %100 = vmatprep.subr.mxu0 0.0
    %101 = vmatpush1.msra.mxu0 %v77
    %102 = vmatprep.subr.mxu0 0.0
    %103 = vmatpush1.msra.mxu0 %v78
    %104 = vmatprep.subr.mxu0 0.0
    %105 = vmatpush1.msra.mxu0 %v79
    %106 = vmatprep.subr.mxu0 0.0
    %107 = vmatpush1.msra.mxu0 %v80
    %108 = vmatprep.subr.mxu0 0.0
    %109 = vmatpush1.msra.mxu0 %v81
    %110 = vmatprep.subr.mxu0 0.0
    %111 = vmatpush1.msra.mxu0 %v82
    %112 = vmatprep.subr.mxu0 0.0
    %113 = vmatpush1.msra.mxu0 %v83
    %114 = vmatprep.subr.mxu0 0.0
    %115 = vmatpush1.msra.mxu0 %v84
    %116 = vmatprep.subr.mxu0 0.0
    %117 = vmatpush1.msra.mxu0 %v85
    %118 = vmatprep.subr.mxu0 0.0
    %119 = vmatpush1.msra.mxu0 %v86
    %120 = vmatprep.subr.mxu0 0.0
    %121 = vmatpush1.msra.mxu0 %v87
    %122 = vmatprep.subr.mxu0 0.0
    %123 = vmatpush1.msra.mxu0 %v88
    %124 = vmatprep.subr.mxu0 0.0
    %125 = vmatpush1.msra.mxu0 %v89
    %126 = vmatprep.subr.mxu0 0.0
    %127 = vmatpush1.msra.mxu0 %v90
    %128 = vmatprep.subr.mxu0 0.0
    %129 = vmatpush1.msra.mxu0 %v91
    %130 = vmatprep.subr.mxu0 0.0
    %131 = vmatpush1.msra.mxu0 %v92
    %132 = vmatprep.subr.mxu0 0.0
    %133 = vmatpush1.msra.mxu0 0.0
    %134 = vmatprep.subr.mxu0 0.0
    %135 = vmatpush1.msra.mxu0 0.0
    %136 = vmatprep.subr.mxu0 0.0
    %137 = vmatpush1.msra.mxu0 0.0
    %138 = vmatprep.subr.mxu0 0.0
    %139 = vmatpush1.msra.mxu0 0.0
    %140 = vmatprep.subr.mxu0 0.0
    %141 = vmatpush1.msra.mxu0 0.0
    %142 = vmatprep.subr.mxu0 0.0
    %143 = vmatpush1.msra.mxu0 0.0
    %144 = vmatprep.subr.mxu0 0.0
    %145 = vmatpush1.msra.mxu0 0.0
    %146 = vmatprep.subr.mxu0 0.0
    %147 = vmatpush1.msra.mxu0 0.0
    %148 = vmatprep.subr.mxu0 0.0
    %149 = vmatpush1.msra.mxu0 0.0
    %150 = vmatprep.subr.mxu0 0.0
    %151 = vmatpush1.msra.mxu0 0.0
    %152 = vmatprep.subr.mxu0 0.0
    %153 = vmatpush1.msra.mxu0 0.0
    %154 = vmatprep.subr.mxu0 0.0
    %155 = vmatpush1.msra.mxu0 0.0
    %156 = vmatprep.subr.mxu0 0.0
    %157 = vmatpush1.msra.mxu0 0.0
    %158 = vmatprep.subr.mxu0 0.0
    %159 = vmatpush1.msra.mxu0 0.0
    %160 = vmatprep.subr.mxu0 0.0
    %161 = vmatpush1.msra.mxu0 0.0
    %162 = vmatprep.subr.mxu0 0.0
    %163 = vmatpush1.msra.mxu0 0.0
    %164 = vmatprep.mubr.f32.mxu0 0.0
    %165 = vmatmul.mubr.f32.gmra.mrb[0].mxu0 %v75
    %v166 = vpop.f32.mrb[0].mxu0
    %v167 = vadd.f32 %v98, %v166
    %v168 = vpop.f32.mrb[0].mxu0
    %169 = vmatprep.mubr.f32.mxu0 0.0
    %170 = vmatmul.mubr.f32.gmra.mrb[0].mxu0 %v76
    %v171 = vpop.f32.mrb[0].mxu0
    %v172 = vadd.f32 %v98, %v171
    %v173 = vpop.f32.mrb[0].mxu0
    %174 = vdwg.mxu0
    %v175 = vmul.f32 %v167, 0.5
    %v176 = vmul.f32 %v172, 0.5
    %v177 = vmul.f32 %v167, 0.70710677
    %v178 = vmul.f32 %v172, 0.70710677
    %v179 = verf.f32.pop %v177
    %v180 = verf.f32.pop %v178
    %v181 = vadd.f32 %v179, 1.0
    %v182 = vadd.f32 %v180, 1.0
    %v183 = vmul.f32 %v175, %v181
    %v184 = vmul.f32 %v176, %v182
    %v185 = vld [vmem:[#allocation2] sm:$0xff]
    %v186 = vld [vmem:[#allocation2 + $0x8] sm:$0xff]
    %v187 = vld [vmem:[#allocation8] sm:$0xff]
    %v188 = vld [vmem:[#allocation8 + $0x8] sm:$0xff]
    %v189 = vld [vmem:[#allocation8 + $0x10] sm:$0xff]
    %v190 = vld [vmem:[#allocation8 + $0x18] sm:$0xff]
    %v191 = vld [vmem:[#allocation8 + $0x20] sm:$0xff]
    %v192 = vld [vmem:[#allocation8 + $0x28] sm:$0xff]
    %v193 = vld [vmem:[#allocation8 + $0x30] sm:$0xff]
    %v194 = vld [vmem:[#allocation8 + $0x38] sm:$0xff]
    %v195 = vld [vmem:[#allocation8 + $0x40] sm:$0xff]
    %v196 = vld [vmem:[#allocation8 + $0x48] sm:$0xff]
    %v197 = vld [vmem:[#allocation8 + $0x50] sm:$0xff]
    %v198 = vld [vmem:[#allocation8 + $0x58] sm:$0xff]
    %v199 = vld [vmem:[#allocation8 + $0x60] sm:$0xff]
    %v200 = vld [vmem:[#allocation8 + $0x68] sm:$0xff]
    %v201 = vld [vmem:[#allocation8 + $0x70] sm:$0xff]
    %v202 = vld [vmem:[#allocation8 + $0x78] sm:$0xff]
    %203 = vmatprep.subr.mxu0 0.0
    %204 = vmatpush1.msra.mxu0 %v187
    %205 = vmatprep.subr.mxu0 0.0
    %206 = vmatpush1.msra.mxu0 %v188
    %207 = vmatprep.subr.mxu0 0.0
    %208 = vmatpush1.msra.mxu0 %v189
    %209 = vmatprep.subr.mxu0 0.0
    %210 = vmatpush1.msra.mxu0 %v190
    %211 = vmatprep.subr.mxu0 0.0
    %212 = vmatpush1.msra.mxu0 %v191
    %213 = vmatprep.subr.mxu0 0.0
    %214 = vmatpush1.msra.mxu0 %v192
    %215 = vmatprep.subr.mxu0 0.0
    %216 = vmatpush1.msra.mxu0 %v193
    %217 = vmatprep.subr.mxu0 0.0
    %218 = vmatpush1.msra.mxu0 %v194
    %219 = vmatprep.subr.mxu0 0.0
    %220 = vmatpush1.msra.mxu0 %v195
    %221 = vmatprep.subr.mxu0 0.0
    %222 = vmatpush1.msra.mxu0 %v196
    %223 = vmatprep.subr.mxu0 0.0
    %224 = vmatpush1.msra.mxu0 %v197
    %225 = vmatprep.subr.mxu0 0.0
    %226 = vmatpush1.msra.mxu0 %v198
    %227 = vmatprep.subr.mxu0 0.0
    %228 = vmatpush1.msra.mxu0 %v199
    %229 = vmatprep.subr.mxu0 0.0
    %230 = vmatpush1.msra.mxu0 %v200
    %231 = vmatprep.subr.mxu0 0.0
    %232 = vmatpush1.msra.mxu0 %v201
    %233 = vmatprep.subr.mxu0 0.0
    %234 = vmatpush1.msra.mxu0 %v202
    %235 = vmatprep.subr.mxu0 0.0
    %236 = vmatpush1.msra.mxu0 0.0
    %237 = vmatprep.subr.mxu0 0.0
    %238 = vmatpush1.msra.mxu0 0.0
    %239 = vmatprep.subr.mxu0 0.0
    %240 = vmatpush1.msra.mxu0 0.0
    %241 = vmatprep.subr.mxu0 0.0
    %242 = vmatpush1.msra.mxu0 0.0
    %243 = vmatprep.subr.mxu0 0.0
    %244 = vmatpush1.msra.mxu0 0.0
    %245 = vmatprep.subr.mxu0 0.0
    %246 = vmatpush1.msra.mxu0 0.0
    %247 = vmatprep.subr.mxu0 0.0
    %248 = vmatpush1.msra.mxu0 0.0
    %249 = vmatprep.subr.mxu0 0.0
    %250 = vmatpush1.msra.mxu0 0.0
    %251 = vmatprep.subr.mxu0 0.0
    %252 = vmatpush1.msra.mxu0 0.0
    %253 = vmatprep.subr.mxu0 0.0
    %254 = vmatpush1.msra.mxu0 0.0
    %255 = vmatprep.subr.mxu0 0.0
    %256 = vmatpush1.msra.mxu0 0.0
    %257 = vmatprep.subr.mxu0 0.0
    %258 = vmatpush1.msra.mxu0 0.0
    %259 = vmatprep.subr.mxu0 0.0
    %260 = vmatpush1.msra.mxu0 0.0
    %261 = vmatprep.subr.mxu0 0.0
    %262 = vmatpush1.msra.mxu0 0.0
    %263 = vmatprep.subr.mxu0 0.0
    %264 = vmatpush1.msra.mxu0 0.0
    %265 = vmatprep.subr.mxu0 0.0
    %266 = vmatpush1.msra.mxu0 0.0
    %267 = vmatprep.mubr.f32.mxu0 0.0
    %268 = vmatmul.mubr.f32.gmra.mrb[0].mxu0 %v183
    %v269 = vpop.f32.mrb[0].mxu0
    %v270 = vadd.f32 0.0, %v269
    %v271 = vpop.f32.mrb[0].mxu0
    %272 = vmatprep.mubr.f32.mxu0 0.0
    %273 = vmatmul.mubr.f32.gmra.mrb[0].mxu0 %v184
    %v274 = vpop.f32.mrb[0].mxu0
    %v275 = vadd.f32 0.0, %v274
    %v276 = vpop.f32.mrb[0].mxu0
    %277 = vdwg.mxu0
    %v278 = vadd.f32 %v185, %v270
    %v279 = vadd.f32 %v186, %v275
    %280 = vst [vmem:[#allocation2] sm:$0xff] %v278
    %281 = vst [vmem:[#allocation2 + $0x8] sm:$0xff] %v279
    // Predicated region
    $region38: #{tpu_custom_call.1} parent=1 // pred_check
      %p282 = pneg %p62
    $region39: #{tpu_custom_call.1} parent=1 // pred_check_branch
      %284 = sbr.rel (%p282) target = $region41
    $region40: #{tpu_custom_call.1} parent=1 // pred_region
      %v285 = vld [vmem:[#allocation2] sm:$0xff]
      %v286 = vld [vmem:[#allocation2 + $0x8] sm:$0xff]
      %287 = vst [vmem:[#allocation9] sm:$0xff] %v285
      %288 = vst [vmem:[#allocation9 + $0x8] sm:$0xff] %v286
    $region41: #{tpu_custom_call.1} parent=1 // pred_fallthru
      _
    // Predicated region
    $region42: #{tpu_custom_call.1} parent=1 // pred_check
      _
    $region43: #{tpu_custom_call.1} parent=1 // pred_check_branch
      %290 = sbr.rel (0) target = $region45
    $region44: #{tpu_custom_call.1} parent=1 // pred_region
      %s292 = ssub.s32 256, 256
      %293 = vsyncadd [#allocation5], %s292
      %s294 = sshll.u32 [#allocation9], 4
      %s295 = int_to_ptr.vmem [resolvable:$true] %s294
      %300 = dma.vmem_to_hbm [thread:$0]  %s295, 256, %s5, [#allocation5], 128, 128, 8
    $region45: #{tpu_custom_call.1} parent=1 // pred_fallthru
      _
    // Predicated region
    $region46: #{tpu_custom_call.1} parent=1 // pred_check
      _
    $region47: #{tpu_custom_call.1} parent=1 // pred_check_branch
      %302 = sbr.rel (0) target = $region49
    $region48: #{tpu_custom_call.1} parent=1 // pred_region
      %303 = dma.done [#allocation5], 256
    $region49: #{tpu_custom_call.1} parent=1 // pred_fallthru
      _
    %304 = vsyncpa [#allocation4], 1
    %305 = vsyncpa [#allocation7], 1
    %306 = vsyncpa [#allocation5], 1

</llo_original>
